<compile_context>
chip_gen: v6e
topology: v6e:2x2x1
jax: 0.10.0
libtpu: 0.0.40
codegen_flags: <defaults>
</compile_context>

<pallas_src>
import functools

import jax
import jax.numpy as jnp
from jax.experimental import pallas as pl
from jax.experimental.pallas import tpu as pltpu

_LANE = 128
_SUBLANE = 8


def _round_up(n: int, m: int) -> int:
    return ((n + m - 1) // m) * m


def _linreg_kernel(x_ref, w_ref, b_ref, o_ref):
    # x_ref: (TM, Dp) bf16, w_ref: (Dp, Op) bf16, b_ref: (1, Op) f32.
    # MXU matmul with f32 accumulation; bias add done in f32 on the VPU.
    acc = jnp.dot(x_ref[...], w_ref[...], preferred_element_type=jnp.float32)
    o_ref[...] = (acc + b_ref[...]).astype(o_ref.dtype)


@jax.jit
def _forward_impl(x: jnp.ndarray, weight: jnp.ndarray, bias: jnp.ndarray):
    B, D = x.shape
    O = weight.shape[1]

    # Pad to lane/sublane-friendly shapes.
    Dp = _round_up(D, _LANE)
    Op = _round_up(O, _LANE)
    B8 = _round_up(B, _SUBLANE)
    # >=512-row tiles when the batch is big enough (good fraction of HBM
    # roofline); otherwise a single full-batch tile.
    TM = 512 if B8 >= 512 else B8
    Bp = _round_up(B8, TM)

    # bf16 inputs (bandwidth-bound kernel), f32 bias.  Padded regions are
    # zero so they contribute nothing and are sliced away afterwards.
    x_p = jnp.zeros((Bp, Dp), jnp.bfloat16).at[:B, :D].set(
        x.astype(jnp.bfloat16))
    w_p = jnp.zeros((Dp, Op), jnp.bfloat16).at[:D, :O].set(
        weight.astype(jnp.bfloat16))
    b_p = jnp.zeros((1, Op), jnp.float32).at[:, :O].set(
        bias.astype(jnp.float32))

    grid = (Bp // TM,)

    out_padded = pl.pallas_call(
        _linreg_kernel,
        out_shape=jax.ShapeDtypeStruct((Bp, Op), jnp.float32),
        grid_spec=pltpu.PrefetchScalarGridSpec(
            num_scalar_prefetch=0,
            grid=grid,
            in_specs=[
                # x: one (TM, Dp) tile per batch-grid step (double-buffered).
                pl.BlockSpec((TM, Dp), lambda i: (i, 0)),
                # weight: VMEM-resident across all grid steps.
                pl.BlockSpec((Dp, Op), lambda i: (0, 0)),
                # bias: VMEM-resident across all grid steps.
                pl.BlockSpec((1, Op), lambda i: (0, 0)),
            ],
            out_specs=pl.BlockSpec((TM, Op), lambda i: (i, 0)),
        ),
        compiler_params=pltpu.CompilerParams(
            # Batch tiles are independent -> shard across TCs on v7x.
            dimension_semantics=("parallel",),
            # Fits comfortably within v7x's 64 MiB physical VMEM with
            # double-buffered (512, Dp) bf16 tiles; generous on v5e/v6e.
            vmem_limit_bytes=48 * 1024 * 1024,
        ),
    )(x_p, w_p, b_p)

    return out_padded[:B, :O]


class AbstractRegressionModelPallas:
    """JAX/Pallas counterpart of AbstractRegressionModel with a minimal
    concrete regression forward (linear head)."""

    def __init__(self, in_features: int, out_features: int = 1, seed: int = 0):
        # Mirror of nn.Parameter(torch.empty(0)) -- an empty parameter.
        self.dummy_param = jnp.zeros((0,), dtype=jnp.float32)

        key_w, key_b = jax.random.split(jax.random.PRNGKey(seed))
        # Deterministic synthetic parameters (no checkpoint load).
        self.weight = jax.random.normal(
            key_w, (in_features, out_features), dtype=jnp.float32) * 0.1
        self.bias = jax.random.normal(
            key_b, (1, out_features), dtype=jnp.float32) * 0.1

    def forward(self, x: jnp.ndarray) -> jnp.ndarray:
        return _forward_impl(x, self.weight, self.bias)

    def predict(self, x: jnp.ndarray):
        # eval() / no_grad() have no Pallas equivalent: inference-only by
        # construction (no autodiff trace, no dropout/batchnorm state here).
        return self.forward(x)


if __name__ == "__main__":
    batch, hidden, out_dim = 8, 32, 1

    key = jax.random.PRNGKey(0)
    x = jax.random.normal(key, (batch, hidden), dtype=jnp.float32)

    model = AbstractRegressionModelPallas(in_features=hidden,
                                          out_features=out_dim, seed=0)

    y = model.predict(x)
    jax.block_until_ready(y)

    # Sanity check against plain-JAX references of the same forward.
    y_ref_f32 = x @ model.weight + model.bias
    y_ref_bf16 = (jnp.dot(x.astype(jnp.bfloat16),
                          model.weight.astype(jnp.bfloat16),
                          preferred_element_type=jnp.float32)
                  + model.bias)
    assert y.shape == (batch, out_dim)
    assert jnp.allclose(y, y_ref_bf16, atol=1e-3, rtol=1e-3)
    assert jnp.allclose(y, y_ref_f32, atol=2e-2, rtol=2e-2)

    print("KERNEL_OK")
</pallas_src>

<mosaic_0001>
module attributes {stable_mosaic.version = 11 : i64} {
  func.func @_linreg_kernel(%arg0: i32, %arg1: memref<8x128xbf16, #tpu.memory_space<vmem>>, %arg2: memref<128x128xbf16, #tpu.memory_space<vmem>>, %arg3: memref<1x128xf32, #tpu.memory_space<vmem>>, %arg4: memref<8x128xf32, #tpu.memory_space<vmem>>) attributes {dimension_semantics = [#tpu.dimension_semantics<parallel>], iteration_bounds = array<i64: 1>, scalar_prefetch = 0 : i64, scratch_operands = 0 : i64, tpu.core_type = #tpu.core_type<tc>, window_params = [{transform_indices = @transform_0, window_bounds = array<i64: 8, 128>}, {pipeline_mode = #tpu.pipeline_mode<synchronous>, transform_indices = @transform_1, window_bounds = array<i64: 128, 128>}, {pipeline_mode = #tpu.pipeline_mode<synchronous>, transform_indices = @transform_2, window_bounds = array<i64: 1, 128>}, {transform_indices = @transform_3, window_bounds = array<i64: 8, 128>}]} {
    %c0 = arith.constant 0 : index
    %c0_0 = arith.constant 0 : index
    %0 = vector.load %arg1[%c0, %c0_0] : memref<8x128xbf16, #tpu.memory_space<vmem>>, vector<8x128xbf16>
    %c0_1 = arith.constant 0 : index
    %c0_2 = arith.constant 0 : index
    %1 = vector.load %arg2[%c0_1, %c0_2] : memref<128x128xbf16, #tpu.memory_space<vmem>>, vector<128x128xbf16>
    %cst = arith.constant dense<0.000000e+00> : vector<8x128xf32>
    %2 = tpu.matmul %0, %1, %cst {dimension_numbers = #tpu.dot_dimension_numbers<[1], [0], [0], [1], [0, 0, 1, 1], [], []>} : vector<8x128xbf16>, vector<128x128xbf16>, vector<8x128xf32> -> vector<8x128xf32>
    %c0_3 = arith.constant 0 : index
    %c0_4 = arith.constant 0 : index
    %3 = vector.load %arg3[%c0_3, %c0_4] : memref<1x128xf32, #tpu.memory_space<vmem>>, vector<1x128xf32>
    %4 = vector.broadcast %3 : vector<1x128xf32> to vector<8x128xf32>
    %5 = arith.addf %2, %4 : vector<8x128xf32>
    %c0_5 = arith.constant 0 : index
    %c0_6 = arith.constant 0 : index
    %6 = vector.load %arg4[%c0_5, %c0_6] : memref<8x128xf32, #tpu.memory_space<vmem>>, vector<8x128xf32>
    tpu.vector_store %arg4[%c0_5, %c0_6], %5 {strides = array<i32>} : memref<8x128xf32, #tpu.memory_space<vmem>>, vector<8x128xf32>,
    return
  }
  func.func @transform_0(%arg0: i32) -> (i32, i32) {
    %c0_i32 = arith.constant 0 : i32
    %c0_i32_0 = arith.constant 0 : i32
    return %arg0, %c0_i32 : i32, i32
  }
  func.func @transform_1(%arg0: i32) -> (i32, i32) {
    %c0_i32 = arith.constant 0 : i32
    %c0_i32_0 = arith.constant 0 : i32
    %c0_i32_1 = arith.constant 0 : i32
    return %c0_i32, %c0_i32_0 : i32, i32
  }
  func.func @transform_2(%arg0: i32) -> (i32, i32) {
    %c0_i32 = arith.constant 0 : i32
    %c0_i32_0 = arith.constant 0 : i32
    %c0_i32_1 = arith.constant 0 : i32
    return %c0_i32, %c0_i32_0 : i32, i32
  }
  func.func @transform_3(%arg0: i32) -> (i32, i32) {
    %c0_i32 = arith.constant 0 : i32
    %c0_i32_0 = arith.constant 0 : i32
    return %arg0, %c0_i32 : i32, i32
  }
}

</mosaic_0001>

<llo_original>
// kernel: _forward_impl.1
$region0: #{_forward_impl.1}
  #allocation0 [shape = 'u32[]', space=smem, size = 0x4, offset = 0x4, fixed_abs, tag = 'smem constant byte address 0x4 - core index']
  #allocation1 [shape = 'u32[144,128]{1,0:T(1,128)}', space=vmem, size = 0x12000, scoped, tag = 'internal scratch']
  %s0 = inlined_call_operand.vmem [shape: bf16[8,128], index: 0, kind: input, shape index: {}]
  %s1 = inlined_call_operand.vmem [shape: bf16[128,128], index: 1, kind: input, shape index: {}]
  %s2 = inlined_call_operand.vmem [shape: f32[1,128], index: 2, kind: input, shape index: {}]
  %s3 = inlined_call_operand.vmem [shape: f32[8,128], index: 3, kind: output, shape index: {}]
  %s4 = sld [smem:[#allocation0]]
  $region22: #{_forward_impl.1} parent=0
    _
  %s6 = ssub.s32 1, %s4
  %s7 = scalar_select 0, %s6, %s4
  // Predicated region
  $region2: #{_forward_impl.1} parent=0 // pred_check
    _
  $region3: #{_forward_impl.1} parent=0 // pred_check_branch
    %9 = sbr.rel (0) target = $region5
  $region4: #{_forward_impl.1} parent=0 // pred_region
    _
  $region5: #{_forward_impl.1} parent=0 // pred_fallthru
    _
  // Predicated region
  $region6: #{_forward_impl.1} parent=0 // pred_check
    _
  $region7: #{_forward_impl.1} parent=0 // pred_check_branch
    %11 = sbr.rel (0) target = $region9
  $region8: #{_forward_impl.1} parent=0 // pred_region
    _
  $region9: #{_forward_impl.1} parent=0 // pred_fallthru
    _
  // Predicated region
  $region10: #{_forward_impl.1} parent=0 // pred_check
    _
  $region11: #{_forward_impl.1} parent=0 // pred_check_branch
    %13 = sbr.rel (0) target = $region13
  $region12: #{_forward_impl.1} parent=0 // pred_region
    _
  $region13: #{_forward_impl.1} parent=0 // pred_fallthru
    _
  %v15 = vld [vmem:[%s0] sm:$0xf]
  %v16 = vld [vmem:[%s1] sm:$0xf]
  %v17 = vld [vmem:[%s1 + $0x4] sm:$0xf]
  %v18 = vld [vmem:[%s1 + $0x8] sm:$0xf]
  %v19 = vld [vmem:[%s1 + $0xc] sm:$0xf]
  %v20 = vld [vmem:[%s1 + $0x10] sm:$0xf]
  %v21 = vld [vmem:[%s1 + $0x14] sm:$0xf]
  %v22 = vld [vmem:[%s1 + $0x18] sm:$0xf]
  %v23 = vld [vmem:[%s1 + $0x1c] sm:$0xf]
  %v24 = vld [vmem:[%s1 + $0x20] sm:$0xf]
  %v25 = vld [vmem:[%s1 + $0x24] sm:$0xf]
  %v26 = vld [vmem:[%s1 + $0x28] sm:$0xf]
  %v27 = vld [vmem:[%s1 + $0x2c] sm:$0xf]
  %v28 = vld [vmem:[%s1 + $0x30] sm:$0xf]
  %v29 = vld [vmem:[%s1 + $0x34] sm:$0xf]
  %v30 = vld [vmem:[%s1 + $0x38] sm:$0xf]
  %v31 = vld [vmem:[%s1 + $0x3c] sm:$0xf]
  %v32 = vld [vmem:[%s2] sm:$0x1]
  %v34 = vlaneseq
  %v35 = vshrl.u32 %v34, 7
  %v36 = vsub.s32 0, %v35
  %v37 = vrot.slane %v32, %v36
  %v55 = vunpack.c.l.b16 %v16
  %v56 = vunpack.c.l.b16 %v17
  %v57 = vunpack.c.l.b16 %v18
  %v58 = vunpack.c.l.b16 %v19
  %v59 = vunpack.c.l.b16 %v20
  %v60 = vunpack.c.l.b16 %v21
  %v61 = vunpack.c.l.b16 %v22
  %v62 = vunpack.c.l.b16 %v23
  %v63 = vunpack.c.l.b16 %v24
  %v64 = vunpack.c.l.b16 %v25
  %v65 = vunpack.c.l.b16 %v26
  %v66 = vunpack.c.l.b16 %v27
  %v67 = vunpack.c.l.b16 %v28
  %v68 = vunpack.c.l.b16 %v29
  %v69 = vunpack.c.l.b16 %v30
  %v70 = vunpack.c.l.b16 %v31
  %v71 = vpack.c.b16 %v56, %v55
  %v72 = vpack.c.b16 %v58, %v57
  %v73 = vpack.c.b16 %v60, %v59
  %v74 = vpack.c.b16 %v62, %v61
  %v75 = vpack.c.b16 %v64, %v63
  %v76 = vpack.c.b16 %v66, %v65
  %v77 = vpack.c.b16 %v68, %v67
  %v78 = vpack.c.b16 %v70, %v69
  %87 = vmatprep.subr.bf16.mxu0 0
  %88 = vmatpush1.bf16.msra.mxu0 %v78
  %89 = vmatprep.subr.bf16.mxu0 0
  %90 = vmatpush1.bf16.msra.mxu0 %v77
  %91 = vmatprep.subr.bf16.mxu0 0
  %92 = vmatpush1.bf16.msra.mxu0 %v76
  %93 = vmatprep.subr.bf16.mxu0 0
  %94 = vmatpush1.bf16.msra.mxu0 %v75
  %95 = vmatprep.subr.bf16.mxu0 0
  %96 = vmatpush1.bf16.msra.mxu0 %v74
  %97 = vmatprep.subr.bf16.mxu0 0
  %98 = vmatpush1.bf16.msra.mxu0 %v73
  %99 = vmatprep.subr.bf16.mxu0 0
  %100 = vmatpush1.bf16.msra.mxu0 %v72
  %101 = vmatprep.subr.bf16.mxu0 0
  %102 = vmatpush1.bf16.msra.mxu0 %v71
  %103 = vmatprep.subr.bf16.mxu0 0
  %104 = vmatpush2.bf16.msra.mxu0 0
  %105 = vmatprep.subr.bf16.mxu0 0
  %106 = vmatpush2.bf16.msra.mxu0 0
  %107 = vmatprep.subr.bf16.mxu0 0
  %108 = vmatpush2.bf16.msra.mxu0 0
  %109 = vmatprep.subr.bf16.mxu0 0
  %110 = vmatpush2.bf16.msra.mxu0 0
  %111 = vmatprep.subr.bf16.mxu0 0
  %112 = vmatpush2.bf16.msra.mxu0 0
  %113 = vmatprep.subr.bf16.mxu0 0
  %114 = vmatpush2.bf16.msra.mxu0 0
  %115 = vmatprep.subr.bf16.mxu0 0
  %116 = vmatpush2.bf16.msra.mxu0 0
  %117 = vmatprep.subr.bf16.mxu0 0
  %118 = vmatpush2.bf16.msra.mxu0 0
  %119 = vmatprep.mubr.bf16.mxu0 0
  %120 = vmatmul.mubr.bf16.gmra.mxu0 %v15
  %v121 = vpop.f32.mrf.mxu0
  %v122 = vadd.f32 %v37, %v121
  %v123 = vpop.f32.mrf.mxu0
  %v124 = vpop.f32.mrf.mxu0
  %v125 = vpop.f32.mrf.mxu0
  %126 = vdwg.mxu0
  %127 = vst [vmem:[%s3] sm:$0xff] %v122
  // Predicated region
  $region14: #{_forward_impl.1} parent=0 // pred_check
    _
  $region15: #{_forward_impl.1} parent=0 // pred_check_branch
    %129 = sbr.rel (0) target = $region17
  $region16: #{_forward_impl.1} parent=0 // pred_region
    _
  $region17: #{_forward_impl.1} parent=0 // pred_fallthru
    _
  // Predicated region
  $region18: #{_forward_impl.1} parent=0 // pred_check
    _
  $region19: #{_forward_impl.1} parent=0 // pred_check_branch
    %131 = sbr.rel (0) target = $region21
  $region20: #{_forward_impl.1} parent=0 // pred_region
    _
  $region21: #{_forward_impl.1} parent=0 // pred_fallthru
    _

</llo_original>
